<compile_context>
chip_gen: v6e
topology: v6e:2x2x1
jax: 0.10.0
libtpu: 0.0.40
codegen_flags: <defaults>
</compile_context>

<pallas_src>
import functools

import jax
import jax.numpy as jnp
from jax.experimental import pallas as pl
from jax.experimental.pallas import tpu as pltpu


def _round_up(x, m):
    return ((x + m - 1) // m) * m


def _default_pack():
    """pack-4 on 256x256-MXU generations (v6e/v7x), pack-2 otherwise (v5e)."""
    try:
        kind = jax.devices()[0].device_kind.lower()
    except Exception:
        return 2
    if any(tag in kind for tag in ("v6", "v7", "7x")):
        return 4
    return 2


def _block_diag(w, pack):
    """blockdiag(w, ..., w) with `pack` copies (host-side, tiny)."""
    if pack == 1:
        return w
    k, n = w.shape
    out = jnp.zeros((pack * k, pack * n), w.dtype)
    for p in range(pack):
        out = out.at[p * k:(p + 1) * k, p * n:(p + 1) * n].set(w)
    return out


def _fuse_linear_chain(layers, relu_flags):
    """Fold consecutive Linear layers that have no nonlinearity between them."""
    fused_layers, fused_flags = [], []
    i, n = 0, len(layers)
    while i < n:
        w, b = layers[i]
        flag = relu_flags[i]
        while (not flag) and (i + 1 < n):
            w2, b2 = layers[i + 1]
            w = w @ w2
            b = b @ w2 + b2
            flag = relu_flags[i + 1]
            i += 1
        fused_layers.append((w, b))
        fused_flags.append(flag)
        i += 1
    return fused_layers, fused_flags


# ----------------------------------------------------------------------------
# Fused kernel: the whole encoder+decoder stack on one (TM, pack*in_dim) tile.
# ----------------------------------------------------------------------------
def _ae_fused_kernel(x_ref, *refs, relu_flags, compute_dtype):
    # refs = (w1, b1, w2, b2, ..., wL, bL, o_ref)
    o_ref = refs[-1]
    wb = refs[:-1]
    h = x_ref[...]                                 # streaming dtype (f32/bf16)
    n_layers = len(relu_flags)
    for li, use_relu in enumerate(relu_flags):
        w = wb[2 * li][...]                        # (Kp, Np), VMEM-resident
        b = wb[2 * li + 1][...]                    # (1, Np) float32
        acc = jnp.dot(h, w, preferred_element_type=jnp.float32) + b
        if use_relu:
            acc = jnp.maximum(acc, 0.0)            # elementwise in f32 (v5e-safe)
        # Cast back to the streaming dtype for the next MXU pass (keeps the
        # MXU on its native bf16 path when streaming bf16).
        h = acc.astype(compute_dtype) if li + 1 < n_layers else acc
    o_ref[...] = h.astype(o_ref.dtype)


def ae_forward(x, enc_params, dec_params, in_dim, *, tm=8192,
               stream_dtype=None, pack=None):
    """Fused AE forward: flatten -> encoder -> decoder, one pallas_call.

    tm           : cap on ORIGINAL batch rows per grid step.
    stream_dtype : dtype of the HBM-facing x/out streams and the weights
                   (e.g. jnp.bfloat16); None keeps the input dtype exactly.
    pack         : lane-dense row-packing factor (None -> per-generation
                   default; falls back when M is not divisible).
    """
    x2 = x.reshape((-1, in_dim))                   # x.view((-1, in_dim))
    M = x2.shape[0]
    compute_dtype = jnp.dtype(stream_dtype) if stream_dtype is not None else x2.dtype

    # --- Linear chain + host-side fusion of the ReLU-free middle pair --------
    layers = [(jnp.asarray(w, jnp.float32), jnp.asarray(b, jnp.float32))
              for (w, b) in (list(enc_params) + list(dec_params))]
    n_enc, n_dec = len(enc_params), len(dec_params)
    relu_flags = ([li < n_enc - 1 for li in range(n_enc)]
                  + [li < n_dec - 1 for li in range(n_dec)])
    layers, relu_flags = _fuse_linear_chain(layers, relu_flags)
    out_dim = layers[-1][0].shape[1]

    # --- lane-dense row packing ----------------------------------------------
    if pack is None:
        pack = _default_pack()
    while pack > 1 and (M % pack) != 0:
        pack //= 2
    Mpk = M // pack
    in_dim_p, out_dim_p = pack * in_dim, pack * out_dim

    xin = x2.astype(compute_dtype)
    if pack > 1:
        xin = xin.reshape(Mpk, in_dim_p)           # free: contiguous reshape

    # --- batch tile: large (amortize per-step overhead); >=2 tiles when there
    # is enough work, so both v7x TensorCores get grid steps ------------------
    cap = max(8, ((tm // pack) // 8) * 8)
    if Mpk <= 8:
        TM = Mpk                                   # single full-extent block
    else:
        TM = min(cap, _round_up(pl.cdiv(Mpk, 2), 8))
    n_tiles = pl.cdiv(Mpk, TM)                     # ragged last block is fine

    # --- inputs / specs -------------------------------------------------------
    flat_inputs = [xin]
    in_specs = [pl.BlockSpec((TM, in_dim_p), lambda i: (i, 0))]
    flops = 0
    w_bytes = 0
    for (w, b) in layers:
        wp = _block_diag(w, pack).astype(compute_dtype)
        bp = jnp.tile(b.reshape(1, -1), (1, pack)).astype(jnp.float32)
        kp, np_ = wp.shape
        flat_inputs += [wp, bp]
        # Constant index maps -> DMA'd once, kept VMEM-resident across steps.
        in_specs.append(pl.BlockSpec((kp, np_), lambda i: (0, 0)))
        in_specs.append(pl.BlockSpec((1, np_), lambda i: (0, 0)))
        flops += 2 * Mpk * kp * np_
        w_bytes += wp.size * wp.dtype.itemsize + bp.size * 4

    itemsize = jnp.dtype(compute_dtype).itemsize
    stream_bytes = Mpk * (in_dim_p + out_dim_p) * itemsize
    x_blk = TM * in_dim_p * itemsize
    o_blk = TM * out_dim_p * itemsize
    vmem_limit = min(64 << 20,
                     max(32 << 20, 2 * (x_blk + o_blk) + 2 * w_bytes + (8 << 20)))

    out = pl.pallas_call(
        functools.partial(_ae_fused_kernel,
                          relu_flags=tuple(relu_flags),
                          compute_dtype=compute_dtype),
        out_shape=jax.ShapeDtypeStruct((Mpk, out_dim_p), compute_dtype),
        grid=(n_tiles,),
        in_specs=in_specs,
        out_specs=pl.BlockSpec((TM, out_dim_p), lambda i: (i, 0)),
        compiler_params=pltpu.CompilerParams(
            dimension_semantics=("parallel",),     # v7x: shard batch over 2 TCs
            vmem_limit_bytes=int(vmem_limit)),
        cost_estimate=pl.CostEstimate(flops=int(flops), transcendentals=0,
                                      bytes_accessed=int(stream_bytes + w_bytes)),
    )(*flat_inputs)

    if pack > 1:
        out = out.reshape(M, out_dim)              # free: contiguous reshape
    return out


# ----------------------------------------------------------------------------
# Parameter construction (deterministic, mimics nn.Linear's uniform init).
# ----------------------------------------------------------------------------
def init_linear_params(key, fan_in, fan_out):
    kw, kb = jax.random.split(key)
    bound = 1.0 / jnp.sqrt(jnp.float32(fan_in))
    # stored as [in, out]  (transposed vs. PyTorch)
    w = jax.random.uniform(kw, (fan_in, fan_out), jnp.float32, -bound, bound)
    b = jax.random.uniform(kb, (fan_out,), jnp.float32, -bound, bound)
    return w, b


def build_ae_params(key, dims):
    """Encoder: dims[0]->dims[1]->...->dims[-1]; decoder mirrors it."""
    enc, dec = [], []
    keys = jax.random.split(key, 2 * (len(dims) - 1))
    ki = 0
    for i in range(1, len(dims)):                  # encoder layers
        enc.append(init_linear_params(keys[ki], dims[i - 1], dims[i]))
        ki += 1
    for i in range(len(dims) - 1, 0, -1):          # decoder layers
        dec.append(init_linear_params(keys[ki], dims[i], dims[i - 1]))
        ki += 1
    return enc, dec


# ----------------------------------------------------------------------------
# Pure-JAX reference for correctness check (same math, no Pallas, no fusion).
# ----------------------------------------------------------------------------
def ae_forward_ref(x, enc_params, dec_params, in_dim):
    x = x.reshape((-1, in_dim)).astype(jnp.float32)
    n_enc = len(enc_params)
    for li, (w, b) in enumerate(enc_params):
        x = x @ w + b
        if li < n_enc - 1:
            x = jnp.maximum(x, 0.0)
    n_dec = len(dec_params)
    for li, (w, b) in enumerate(dec_params):
        x = x @ w + b
        if li < n_dec - 1:
            x = jnp.maximum(x, 0.0)
    return x


if __name__ == "__main__":
    dims = [64, 32, 16]            # encoder dims; decoder mirrors them
    in_dim = dims[0]

    key = jax.random.PRNGKey(0)
    k_params, k_x, k_big, k_odd, k_bf = jax.random.split(key, 5)
    enc_params, dec_params = build_ae_params(k_params, dims)

    # 1) Small input; forward flattens it to (-1, in_dim) -> (8, 64).
    x = jax.random.normal(k_x, (2, 4, 64), dtype=jnp.float32)
    out = jax.block_until_ready(ae_forward(x, enc_params, dec_params, in_dim))
    ref = ae_forward_ref(x, enc_params, dec_params, in_dim)
    assert out.shape == (8, in_dim), out.shape
    assert jnp.allclose(out, ref, atol=1e-4, rtol=1e-4), "mismatch (small batch)"

    # 2) Larger batch: multi-tile grid, lane-dense packing, ragged last block.
    xb = jax.random.normal(k_big, (520, in_dim), dtype=jnp.float32)
    outb = jax.block_until_ready(ae_forward(xb, enc_params, dec_params, in_dim))
    refb = ae_forward_ref(xb, enc_params, dec_params, in_dim)
    assert outb.shape == (520, in_dim), outb.shape
    assert jnp.allclose(outb, refb, atol=1e-4, rtol=1e-4), "mismatch (large batch)"

    # 3) Odd batch: packing falls back to 1, exercises the unpadded ragged path.
    xo = jax.random.normal(k_odd, (517, in_dim), dtype=jnp.float32)
    outo = jax.block_until_ready(ae_forward(xo, enc_params, dec_params, in_dim))
    refo = ae_forward_ref(xo, enc_params, dec_params, in_dim)
    assert outo.shape == (517, in_dim), outo.shape
    assert jnp.allclose(outo, refo, atol=1e-4, rtol=1e-4), "mismatch (odd batch)"

    # 4) bf16 streaming path (halves HBM bytes): compare with loose tolerance.
    xh = jax.random.normal(k_bf, (1024, in_dim), dtype=jnp.float32)
    outh = jax.block_until_ready(
        ae_forward(xh, enc_params, dec_params, in_dim, stream_dtype=jnp.bfloat16))
    refh = ae_forward_ref(xh, enc_params, dec_params, in_dim)
    assert outh.shape == (1024, in_dim), outh.shape
    rel = jnp.linalg.norm(outh.astype(jnp.float32) - refh) / (jnp.linalg.norm(refh) + 1e-12)
    assert float(rel) < 0.05, f"bf16 path relative error too large: {float(rel)}"

    print("KERNEL_OK")
</pallas_src>

<mosaic_0001>
module attributes {stable_mosaic.version = 11 : i64} {
  func.func @_ae_fused_kernel(%arg0: i32, %arg1: memref<4x128xf32, #tpu.memory_space<vmem>>, %arg2: memref<128x64xf32, #tpu.memory_space<vmem>>, %arg3: memref<1x64xf32, #tpu.memory_space<vmem>>, %arg4: memref<64x64xf32, #tpu.memory_space<vmem>>, %arg5: memref<1x64xf32, #tpu.memory_space<vmem>>, %arg6: memref<64x128xf32, #tpu.memory_space<vmem>>, %arg7: memref<1x128xf32, #tpu.memory_space<vmem>>, %arg8: memref<4x128xf32, #tpu.memory_space<vmem>>) attributes {dimension_semantics = [#tpu.dimension_semantics<parallel>], iteration_bounds = array<i64: 1>, scalar_prefetch = 0 : i64, scratch_operands = 0 : i64, tpu.core_type = #tpu.core_type<tc>, window_params = [{transform_indices = @transform_0, window_bounds = array<i64: 4, 128>}, {pipeline_mode = #tpu.pipeline_mode<synchronous>, transform_indices = @transform_1, window_bounds = array<i64: 128, 64>}, {pipeline_mode = #tpu.pipeline_mode<synchronous>, transform_indices = @transform_2, window_bounds = array<i64: 1, 64>}, {pipeline_mode = #tpu.pipeline_mode<synchronous>, transform_indices = @transform_3, window_bounds = array<i64: 64, 64>}, {pipeline_mode = #tpu.pipeline_mode<synchronous>, transform_indices = @transform_4, window_bounds = array<i64: 1, 64>}, {pipeline_mode = #tpu.pipeline_mode<synchronous>, transform_indices = @transform_5, window_bounds = array<i64: 64, 128>}, {pipeline_mode = #tpu.pipeline_mode<synchronous>, transform_indices = @transform_6, window_bounds = array<i64: 1, 128>}, {transform_indices = @transform_7, window_bounds = array<i64: 4, 128>}]} {
    %c0 = arith.constant 0 : index
    %c0_0 = arith.constant 0 : index
    %0 = vector.load %arg1[%c0, %c0_0] : memref<4x128xf32, #tpu.memory_space<vmem>>, vector<4x128xf32>
    %c0_1 = arith.constant 0 : index
    %c0_2 = arith.constant 0 : index
    %1 = vector.load %arg2[%c0_1, %c0_2] : memref<128x64xf32, #tpu.memory_space<vmem>>, vector<128x64xf32>
    %c0_3 = arith.constant 0 : index
    %c0_4 = arith.constant 0 : index
    %2 = vector.load %arg3[%c0_3, %c0_4] : memref<1x64xf32, #tpu.memory_space<vmem>>, vector<1x64xf32>
    %cst = arith.constant dense<0.000000e+00> : vector<4x64xf32>
    %3 = tpu.matmul %0, %1, %cst {dimension_numbers = #tpu.dot_dimension_numbers<[1], [0], [0], [1], [0, 0, 1, 1], [], []>} : vector<4x128xf32>, vector<128x64xf32>, vector<4x64xf32> -> vector<4x64xf32>
    %4 = vector.broadcast %2 : vector<1x64xf32> to vector<4x64xf32>
    %5 = arith.addf %3, %4 : vector<4x64xf32>
    %cst_5 = arith.constant 0.000000e+00 : f32
    %6 = vector.broadcast %cst_5 : f32 to vector<4x64xf32>
    %7 = arith.maximumf %5, %6 : vector<4x64xf32>
    %c0_6 = arith.constant 0 : index
    %c0_7 = arith.constant 0 : index
    %8 = vector.load %arg4[%c0_6, %c0_7] : memref<64x64xf32, #tpu.memory_space<vmem>>, vector<64x64xf32>
    %c0_8 = arith.constant 0 : index
    %c0_9 = arith.constant 0 : index
    %9 = vector.load %arg5[%c0_8, %c0_9] : memref<1x64xf32, #tpu.memory_space<vmem>>, vector<1x64xf32>
    %cst_10 = arith.constant dense<0.000000e+00> : vector<4x64xf32>
    %10 = tpu.matmul %7, %8, %cst_10 {dimension_numbers = #tpu.dot_dimension_numbers<[1], [0], [0], [1], [0, 0, 1, 1], [], []>} : vector<4x64xf32>, vector<64x64xf32>, vector<4x64xf32> -> vector<4x64xf32>
    %11 = vector.broadcast %9 : vector<1x64xf32> to vector<4x64xf32>
    %12 = arith.addf %10, %11 : vector<4x64xf32>
    %cst_11 = arith.constant 0.000000e+00 : f32
    %13 = vector.broadcast %cst_11 : f32 to vector<4x64xf32>
    %14 = arith.maximumf %12, %13 : vector<4x64xf32>
    %c0_12 = arith.constant 0 : index
    %c0_13 = arith.constant 0 : index
    %15 = vector.load %arg6[%c0_12, %c0_13] : memref<64x128xf32, #tpu.memory_space<vmem>>, vector<64x128xf32>
    %c0_14 = arith.constant 0 : index
    %c0_15 = arith.constant 0 : index
    %16 = vector.load %arg7[%c0_14, %c0_15] : memref<1x128xf32, #tpu.memory_space<vmem>>, vector<1x128xf32>
    %cst_16 = arith.constant dense<0.000000e+00> : vector<4x128xf32>
    %17 = tpu.matmul %14, %15, %cst_16 {dimension_numbers = #tpu.dot_dimension_numbers<[1], [0], [0], [1], [0, 0, 1, 1], [], []>} : vector<4x64xf32>, vector<64x128xf32>, vector<4x128xf32> -> vector<4x128xf32>
    %18 = vector.broadcast %16 : vector<1x128xf32> to vector<4x128xf32>
    %19 = arith.addf %17, %18 : vector<4x128xf32>
    %c0_17 = arith.constant 0 : index
    %c0_18 = arith.constant 0 : index
    %20 = vector.load %arg8[%c0_17, %c0_18] : memref<4x128xf32, #tpu.memory_space<vmem>>, vector<4x128xf32>
    tpu.vector_store %arg8[%c0_17, %c0_18], %19 {strides = array<i32>} : memref<4x128xf32, #tpu.memory_space<vmem>>, vector<4x128xf32>,
    return
  }
  func.func @transform_0(%arg0: i32) -> (i32, i32) {
    %c0_i32 = arith.constant 0 : i32
    %c0_i32_0 = arith.constant 0 : i32
    return %arg0, %c0_i32 : i32, i32
  }
  func.func @transform_1(%arg0: i32) -> (i32, i32) {
    %c0_i32 = arith.constant 0 : i32
    %c0_i32_0 = arith.constant 0 : i32
    %c0_i32_1 = arith.constant 0 : i32
    return %c0_i32, %c0_i32_0 : i32, i32
  }
  func.func @transform_2(%arg0: i32) -> (i32, i32) {
    %c0_i32 = arith.constant 0 : i32
    %c0_i32_0 = arith.constant 0 : i32
    %c0_i32_1 = arith.constant 0 : i32
    return %c0_i32, %c0_i32_0 : i32, i32
  }
  func.func @transform_3(%arg0: i32) -> (i32, i32) {
    %c0_i32 = arith.constant 0 : i32
    %c0_i32_0 = arith.constant 0 : i32
    %c0_i32_1 = arith.constant 0 : i32
    return %c0_i32, %c0_i32_0 : i32, i32
  }
  func.func @transform_4(%arg0: i32) -> (i32, i32) {
    %c0_i32 = arith.constant 0 : i32
    %c0_i32_0 = arith.constant 0 : i32
    %c0_i32_1 = arith.constant 0 : i32
    return %c0_i32, %c0_i32_0 : i32, i32
  }
  func.func @transform_5(%arg0: i32) -> (i32, i32) {
    %c0_i32 = arith.constant 0 : i32
    %c0_i32_0 = arith.constant 0 : i32
    %c0_i32_1 = arith.constant 0 : i32
    return %c0_i32, %c0_i32_0 : i32, i32
  }
  func.func @transform_6(%arg0: i32) -> (i32, i32) {
    %c0_i32 = arith.constant 0 : i32
    %c0_i32_0 = arith.constant 0 : i32
    %c0_i32_1 = arith.constant 0 : i32
    return %c0_i32, %c0_i32_0 : i32, i32
  }
  func.func @transform_7(%arg0: i32) -> (i32, i32) {
    %c0_i32 = arith.constant 0 : i32
    %c0_i32_0 = arith.constant 0 : i32
    return %arg0, %c0_i32 : i32, i32
  }
}

</mosaic_0001>

<llo_original>
// kernel: tpu_custom_call.1
$region0: #{tpu_custom_call.1}
  #allocation0 [shape = 'u32[]', space=smem, size = 0x4, offset = 0x4, fixed_abs, tag = 'smem constant byte address 0x4 - core index']
  #allocation1 [shape = 'u32[144,128]{1,0:T(1,128)}', space=vmem, size = 0x12000, scoped, tag = 'internal scratch']
  %s0 = inlined_call_operand.vmem [shape: f32[4,128], index: 0, kind: input, shape index: {}]
  %s1 = inlined_call_operand.vmem [shape: f32[128,64], index: 1, kind: input, shape index: {}]
  %s2 = inlined_call_operand.vmem [shape: f32[1,64], index: 2, kind: input, shape index: {}]
  %s3 = inlined_call_operand.vmem [shape: f32[64,64], index: 3, kind: input, shape index: {}]
  %s4 = inlined_call_operand.vmem [shape: f32[1,64], index: 4, kind: input, shape index: {}]
  %s5 = inlined_call_operand.vmem [shape: f32[64,128], index: 5, kind: input, shape index: {}]
  %s6 = inlined_call_operand.vmem [shape: f32[1,128], index: 6, kind: input, shape index: {}]
  %s7 = inlined_call_operand.hbm [shape: f32[4,128], index: 7, kind: output, shape index: {}]
  %s8 = sld [smem:[#allocation0]]
  $region38: #{tpu_custom_call.1} parent=0
    _
  %s10 = ssub.s32 1, %s8
  %s11 = scalar_select 0, %s10, %s8
  $region1: #{tpu_custom_call.1} parent=0
    #allocation2 [shape = 'u8[2048]{0}', space=vmem, size = 0x800, scoped, tag = 'output window, operand 0, single buffered']
    #allocation3 [shape = 's32[1]{0}', space=sflag, size = 0x4, scoped, tag = 'scoped memory for tpu_custom_call.1']
    %12 = vsyncpa [#allocation3], 0
    // Predicated region
    $region2: #{tpu_custom_call.1} parent=1 // pred_check
      _
    $region3: #{tpu_custom_call.1} parent=1 // pred_check_branch
      %14 = sbr.rel (0) target = $region5
    $region4: #{tpu_custom_call.1} parent=1 // pred_region
      _
    $region5: #{tpu_custom_call.1} parent=1 // pred_fallthru
      _
    // Predicated region
    $region6: #{tpu_custom_call.1} parent=1 // pred_check
      _
    $region7: #{tpu_custom_call.1} parent=1 // pred_check_branch
      %16 = sbr.rel (0) target = $region9
    $region8: #{tpu_custom_call.1} parent=1 // pred_region
      _
    $region9: #{tpu_custom_call.1} parent=1 // pred_fallthru
      _
    // Predicated region
    $region10: #{tpu_custom_call.1} parent=1 // pred_check
      _
    $region11: #{tpu_custom_call.1} parent=1 // pred_check_branch
      %18 = sbr.rel (0) target = $region13
    $region12: #{tpu_custom_call.1} parent=1 // pred_region
      _
    $region13: #{tpu_custom_call.1} parent=1 // pred_fallthru
      _
    // Predicated region
    $region14: #{tpu_custom_call.1} parent=1 // pred_check
      _
    $region15: #{tpu_custom_call.1} parent=1 // pred_check_branch
      %20 = sbr.rel (0) target = $region17
    $region16: #{tpu_custom_call.1} parent=1 // pred_region
      _
    $region17: #{tpu_custom_call.1} parent=1 // pred_fallthru
      _
    // Predicated region
    $region18: #{tpu_custom_call.1} parent=1 // pred_check
      _
    $region19: #{tpu_custom_call.1} parent=1 // pred_check_branch
      %22 = sbr.rel (0) target = $region21
    $region20: #{tpu_custom_call.1} parent=1 // pred_region
      _
    $region21: #{tpu_custom_call.1} parent=1 // pred_fallthru
      _
    // Predicated region
    $region22: #{tpu_custom_call.1} parent=1 // pred_check
      _
    $region23: #{tpu_custom_call.1} parent=1 // pred_check_branch
      %24 = sbr.rel (0) target = $region25
    $region24: #{tpu_custom_call.1} parent=1 // pred_region
      _
    $region25: #{tpu_custom_call.1} parent=1 // pred_fallthru
      _
    // Predicated region
    $region26: #{tpu_custom_call.1} parent=1 // pred_check
      _
    $region27: #{tpu_custom_call.1} parent=1 // pred_check_branch
      %26 = sbr.rel (0) target = $region29
    $region28: #{tpu_custom_call.1} parent=1 // pred_region
      _
    $region29: #{tpu_custom_call.1} parent=1 // pred_fallthru
      _
    %v27 = vld [vmem:[%s0] sm:$0xf]
    %v28 = vld [vmem:[%s1] sm:$0xff]
    %v29 = vld [vmem:[%s1 + $0x8] sm:$0xff]
    %v30 = vld [vmem:[%s1 + $0x10] sm:$0xff]
    %v31 = vld [vmem:[%s1 + $0x18] sm:$0xff]
    %v32 = vld [vmem:[%s1 + $0x20] sm:$0xff]
    %v33 = vld [vmem:[%s1 + $0x28] sm:$0xff]
    %v34 = vld [vmem:[%s1 + $0x30] sm:$0xff]
    %v35 = vld [vmem:[%s1 + $0x38] sm:$0xff]
    %v36 = vld [vmem:[%s1 + $0x40] sm:$0xff]
    %v37 = vld [vmem:[%s1 + $0x48] sm:$0xff]
    %v38 = vld [vmem:[%s1 + $0x50] sm:$0xff]
    %v39 = vld [vmem:[%s1 + $0x58] sm:$0xff]
    %v40 = vld [vmem:[%s1 + $0x60] sm:$0xff]
    %v41 = vld [vmem:[%s1 + $0x68] sm:$0xff]
    %v42 = vld [vmem:[%s1 + $0x70] sm:$0xff]
    %v43 = vld [vmem:[%s1 + $0x78] sm:$0xff]
    %v44 = vld [vmem:[%s2] sm:$0x1]
    %v46 = vlaneseq
    %v47 = vshrl.u32 %v46, 7
    %v48 = vsub.s32 0, %v47
    %v49 = vrot.slane %v44, %v48
    %51 = vmatprep.subr.mxu0 0.0
    %52 = vmatpush1.msra.mxu0 %v43
    %53 = vmatprep.subr.mxu0 0.0
    %54 = vmatpush1.msra.mxu0 %v42
    %55 = vmatprep.subr.mxu0 0.0
    %56 = vmatpush1.msra.mxu0 %v41
    %57 = vmatprep.subr.mxu0 0.0
    %58 = vmatpush1.msra.mxu0 %v40
    %59 = vmatprep.subr.mxu0 0.0
    %60 = vmatpush1.msra.mxu0 %v39
    %61 = vmatprep.subr.mxu0 0.0
    %62 = vmatpush1.msra.mxu0 %v38
    %63 = vmatprep.subr.mxu0 0.0
    %64 = vmatpush1.msra.mxu0 %v37
    %65 = vmatprep.subr.mxu0 0.0
    %66 = vmatpush1.msra.mxu0 %v36
    %67 = vmatprep.subr.mxu0 0.0
    %68 = vmatpush1.msra.mxu0 %v35
    %69 = vmatprep.subr.mxu0 0.0
    %70 = vmatpush1.msra.mxu0 %v34
    %71 = vmatprep.subr.mxu0 0.0
    %72 = vmatpush1.msra.mxu0 %v33
    %73 = vmatprep.subr.mxu0 0.0
    %74 = vmatpush1.msra.mxu0 %v32
    %75 = vmatprep.subr.mxu0 0.0
    %76 = vmatpush1.msra.mxu0 %v31
    %77 = vmatprep.subr.mxu0 0.0
    %78 = vmatpush1.msra.mxu0 %v30
    %79 = vmatprep.subr.mxu0 0.0
    %80 = vmatpush1.msra.mxu0 %v29
    %81 = vmatprep.subr.mxu0 0.0
    %82 = vmatpush1.msra.mxu0 %v28
    %83 = vmatprep.subr.mxu0 0.0
    %84 = vmatpush2.msra.mxu0 0.0
    %85 = vmatprep.subr.mxu0 0.0
    %86 = vmatpush2.msra.mxu0 0.0
    %87 = vmatprep.subr.mxu0 0.0
    %88 = vmatpush2.msra.mxu0 0.0
    %89 = vmatprep.subr.mxu0 0.0
    %90 = vmatpush2.msra.mxu0 0.0
    %91 = vmatprep.subr.mxu0 0.0
    %92 = vmatpush2.msra.mxu0 0.0
    %93 = vmatprep.subr.mxu0 0.0
    %94 = vmatpush2.msra.mxu0 0.0
    %95 = vmatprep.subr.mxu0 0.0
    %96 = vmatpush2.msra.mxu0 0.0
    %97 = vmatprep.subr.mxu0 0.0
    %98 = vmatpush2.msra.mxu0 0.0
    %99 = vmatprep.subr.mxu0 0.0
    %100 = vmatpush2.msra.mxu0 0.0
    %101 = vmatprep.subr.mxu0 0.0
    %102 = vmatpush2.msra.mxu0 0.0
    %103 = vmatprep.subr.mxu0 0.0
    %104 = vmatpush2.msra.mxu0 0.0
    %105 = vmatprep.subr.mxu0 0.0
    %106 = vmatpush2.msra.mxu0 0.0
    %107 = vmatprep.subr.mxu0 0.0
    %108 = vmatpush2.msra.mxu0 0.0
    %109 = vmatprep.subr.mxu0 0.0
    %110 = vmatpush2.msra.mxu0 0.0
    %111 = vmatprep.subr.mxu0 0.0
    %112 = vmatpush2.msra.mxu0 0.0
    %113 = vmatprep.subr.mxu0 0.0
    %114 = vmatpush2.msra.mxu0 0.0
    %115 = vmatprep.mubr.f32.mxu0 0.0
    %116 = vmatmul.mubr.f32.gmra.mxu0 %v27
    %v117 = vpop.f32.mrf.mxu0
    %v118 = vadd.f32 %v49, %v117
    %v119 = vpop.f32.mrf.mxu0
    %120 = vdwg.mxu0
    %v121 = vmax.f32 %v118, 0.0
    %v122 = vld [vmem:[%s3] sm:$0xff]
    %v123 = vld [vmem:[%s3 + $0x8] sm:$0xff]
    %v124 = vld [vmem:[%s3 + $0x10] sm:$0xff]
    %v125 = vld [vmem:[%s3 + $0x18] sm:$0xff]
    %v126 = vld [vmem:[%s3 + $0x20] sm:$0xff]
    %v127 = vld [vmem:[%s3 + $0x28] sm:$0xff]
    %v128 = vld [vmem:[%s3 + $0x30] sm:$0xff]
    %v129 = vld [vmem:[%s3 + $0x38] sm:$0xff]
    %v130 = vld [vmem:[%s4] sm:$0x1]
    %v132 = vlaneseq
    %v133 = vshrl.u32 %v132, 7
    %v134 = vsub.s32 0, %v133
    %v135 = vrot.slane %v130, %v134
    %vm137 = vcmask 523264
    %v139 = vsel %vm137, %v121, 0
    %141 = vmatprep.subr.mxu0 0.0
    %142 = vmatpush1.msra.mxu0 0.0
    %143 = vmatprep.subr.mxu0 0.0
    %144 = vmatpush1.msra.mxu0 0.0
    %145 = vmatprep.subr.mxu0 0.0
    %146 = vmatpush1.msra.mxu0 0.0
    %147 = vmatprep.subr.mxu0 0.0
    %148 = vmatpush1.msra.mxu0 0.0
    %149 = vmatprep.subr.mxu0 0.0
    %150 = vmatpush1.msra.mxu0 0.0
    %151 = vmatprep.subr.mxu0 0.0
    %152 = vmatpush1.msra.mxu0 0.0
    %153 = vmatprep.subr.mxu0 0.0
    %154 = vmatpush1.msra.mxu0 0.0
    %155 = vmatprep.subr.mxu0 0.0
    %156 = vmatpush1.msra.mxu0 0.0
    %157 = vmatprep.subr.mxu0 0.0
    %158 = vmatpush1.msra.mxu0 %v129
    %159 = vmatprep.subr.mxu0 0.0
    %160 = vmatpush1.msra.mxu0 %v128
    %161 = vmatprep.subr.mxu0 0.0
    %162 = vmatpush1.msra.mxu0 %v127
    %163 = vmatprep.subr.mxu0 0.0
    %164 = vmatpush1.msra.mxu0 %v126
    %165 = vmatprep.subr.mxu0 0.0
    %166 = vmatpush1.msra.mxu0 %v125
    %167 = vmatprep.subr.mxu0 0.0
    %168 = vmatpush1.msra.mxu0 %v124
    %169 = vmatprep.subr.mxu0 0.0
    %170 = vmatpush1.msra.mxu0 %v123
    %171 = vmatprep.subr.mxu0 0.0
    %172 = vmatpush1.msra.mxu0 %v122
    %173 = vmatprep.subr.mxu0 0.0
    %174 = vmatpush2.msra.mxu0 0.0
    %175 = vmatprep.subr.mxu0 0.0
    %176 = vmatpush2.msra.mxu0 0.0
    %177 = vmatprep.subr.mxu0 0.0
    %178 = vmatpush2.msra.mxu0 0.0
    %179 = vmatprep.subr.mxu0 0.0
    %180 = vmatpush2.msra.mxu0 0.0
    %181 = vmatprep.subr.mxu0 0.0
    %182 = vmatpush2.msra.mxu0 0.0
    %183 = vmatprep.subr.mxu0 0.0
    %184 = vmatpush2.msra.mxu0 0.0
    %185 = vmatprep.subr.mxu0 0.0
    %186 = vmatpush2.msra.mxu0 0.0
    %187 = vmatprep.subr.mxu0 0.0
    %188 = vmatpush2.msra.mxu0 0.0
    %189 = vmatprep.subr.mxu0 0.0
    %190 = vmatpush2.msra.mxu0 0.0
    %191 = vmatprep.subr.mxu0 0.0
    %192 = vmatpush2.msra.mxu0 0.0
    %193 = vmatprep.subr.mxu0 0.0
    %194 = vmatpush2.msra.mxu0 0.0
    %195 = vmatprep.subr.mxu0 0.0
    %196 = vmatpush2.msra.mxu0 0.0
    %197 = vmatprep.subr.mxu0 0.0
    %198 = vmatpush2.msra.mxu0 0.0
    %199 = vmatprep.subr.mxu0 0.0
    %200 = vmatpush2.msra.mxu0 0.0
    %201 = vmatprep.subr.mxu0 0.0
    %202 = vmatpush2.msra.mxu0 0.0
    %203 = vmatprep.subr.mxu0 0.0
    %204 = vmatpush2.msra.mxu0 0.0
    %205 = vmatprep.mubr.f32.mxu0 0.0
    %206 = vmatmul.mubr.f32.gmra.mxu0 %v139
    %v207 = vpop.f32.mrf.mxu0
    %v208 = vadd.f32 %v135, %v207
    %v209 = vpop.f32.mrf.mxu0
    %210 = vdwg.mxu0
    %v211 = vmax.f32 %v208, 0.0
    %v212 = vld [vmem:[%s5] sm:$0xff]
    %v213 = vld [vmem:[%s5 + $0x8] sm:$0xff]
    %v214 = vld [vmem:[%s5 + $0x10] sm:$0xff]
    %v215 = vld [vmem:[%s5 + $0x18] sm:$0xff]
    %v216 = vld [vmem:[%s5 + $0x20] sm:$0xff]
    %v217 = vld [vmem:[%s5 + $0x28] sm:$0xff]
    %v218 = vld [vmem:[%s5 + $0x30] sm:$0xff]
    %v219 = vld [vmem:[%s5 + $0x38] sm:$0xff]
    %v220 = vld [vmem:[%s6] sm:$0x1]
    %v222 = vlaneseq
    %v223 = vshrl.u32 %v222, 7
    %v224 = vsub.s32 0, %v223
    %v225 = vrot.slane %v220, %v224
    %v228 = vsel %vm137, %v211, 0
    %230 = vmatprep.subr.mxu0 0.0
    %231 = vmatpush1.msra.mxu0 0.0
    %232 = vmatprep.subr.mxu0 0.0
    %233 = vmatpush1.msra.mxu0 0.0
    %234 = vmatprep.subr.mxu0 0.0
    %235 = vmatpush1.msra.mxu0 0.0
    %236 = vmatprep.subr.mxu0 0.0
    %237 = vmatpush1.msra.mxu0 0.0
    %238 = vmatprep.subr.mxu0 0.0
    %239 = vmatpush1.msra.mxu0 0.0
    %240 = vmatprep.subr.mxu0 0.0
    %241 = vmatpush1.msra.mxu0 0.0
    %242 = vmatprep.subr.mxu0 0.0
    %243 = vmatpush1.msra.mxu0 0.0
    %244 = vmatprep.subr.mxu0 0.0
    %245 = vmatpush1.msra.mxu0 0.0
    %246 = vmatprep.subr.mxu0 0.0
    %247 = vmatpush1.msra.mxu0 %v219
    %248 = vmatprep.subr.mxu0 0.0
    %249 = vmatpush1.msra.mxu0 %v218
    %250 = vmatprep.subr.mxu0 0.0
    %251 = vmatpush1.msra.mxu0 %v217
    %252 = vmatprep.subr.mxu0 0.0
    %253 = vmatpush1.msra.mxu0 %v216
    %254 = vmatprep.subr.mxu0 0.0
    %255 = vmatpush1.msra.mxu0 %v215
    %256 = vmatprep.subr.mxu0 0.0
    %257 = vmatpush1.msra.mxu0 %v214
    %258 = vmatprep.subr.mxu0 0.0
    %259 = vmatpush1.msra.mxu0 %v213
    %260 = vmatprep.subr.mxu0 0.0
    %261 = vmatpush1.msra.mxu0 %v212
    %262 = vmatprep.subr.mxu0 0.0
    %263 = vmatpush2.msra.mxu0 0.0
    %264 = vmatprep.subr.mxu0 0.0
    %265 = vmatpush2.msra.mxu0 0.0
    %266 = vmatprep.subr.mxu0 0.0
    %267 = vmatpush2.msra.mxu0 0.0
    %268 = vmatprep.subr.mxu0 0.0
    %269 = vmatpush2.msra.mxu0 0.0
    %270 = vmatprep.subr.mxu0 0.0
    %271 = vmatpush2.msra.mxu0 0.0
    %272 = vmatprep.subr.mxu0 0.0
    %273 = vmatpush2.msra.mxu0 0.0
    %274 = vmatprep.subr.mxu0 0.0
    %275 = vmatpush2.msra.mxu0 0.0
    %276 = vmatprep.subr.mxu0 0.0
    %277 = vmatpush2.msra.mxu0 0.0
    %278 = vmatprep.subr.mxu0 0.0
    %279 = vmatpush2.msra.mxu0 0.0
    %280 = vmatprep.subr.mxu0 0.0
    %281 = vmatpush2.msra.mxu0 0.0
    %282 = vmatprep.subr.mxu0 0.0
    %283 = vmatpush2.msra.mxu0 0.0
    %284 = vmatprep.subr.mxu0 0.0
    %285 = vmatpush2.msra.mxu0 0.0
    %286 = vmatprep.subr.mxu0 0.0
    %287 = vmatpush2.msra.mxu0 0.0
    %288 = vmatprep.subr.mxu0 0.0
    %289 = vmatpush2.msra.mxu0 0.0
    %290 = vmatprep.subr.mxu0 0.0
    %291 = vmatpush2.msra.mxu0 0.0
    %292 = vmatprep.subr.mxu0 0.0
    %293 = vmatpush2.msra.mxu0 0.0
    %294 = vmatprep.mubr.f32.mxu0 0.0
    %295 = vmatmul.mubr.f32.gmra.mxu0 %v228
    %v296 = vpop.f32.mrf.mxu0
    %v297 = vadd.f32 %v225, %v296
    %v298 = vpop.f32.mrf.mxu0
    %299 = vdwg.mxu0
    %300 = vst [vmem:[#allocation2] sm:$0xf] %v297
    // Predicated region
    $region30: #{tpu_custom_call.1} parent=1 // pred_check
      _
    $region31: #{tpu_custom_call.1} parent=1 // pred_check_branch
      %302 = sbr.rel (0) target = $region33
    $region32: #{tpu_custom_call.1} parent=1 // pred_region
      %s304 = ssub.s32 64, 64
      %305 = vsyncadd [#allocation3], %s304
      %s307 = sshll.u32 [#allocation2], 4
      %s308 = int_to_ptr.vmem [resolvable:$true] %s307
      %310 = dma.vmem_to_hbm [thread:$0]  %s308, 64, %s7, [#allocation3]
    $region33: #{tpu_custom_call.1} parent=1 // pred_fallthru
      _
    // Predicated region
    $region34: #{tpu_custom_call.1} parent=1 // pred_check
      _
    $region35: #{tpu_custom_call.1} parent=1 // pred_check_branch
      %312 = sbr.rel (0) target = $region37
    $region36: #{tpu_custom_call.1} parent=1 // pred_region
      %313 = dma.done [#allocation3], 64
    $region37: #{tpu_custom_call.1} parent=1 // pred_fallthru
      _
    %314 = vsyncpa [#allocation3], 1

</llo_original>
